<compile_context>
chip_gen: v5e
topology: v5e:2x2
jax: 0.10.0
libtpu: 0.0.40
codegen_flags: <defaults>
</compile_context>

<pallas_src>
import functools

import jax
import jax.numpy as jnp
from jax.experimental import pallas as pl
from jax.experimental.pallas import tpu as pltpu

LANE = 128  # output lane dim / row-tile quantum (lane-dense stores)


def _round_up(n, m):
    return (n + m - 1) // m * m


def _auto_num_row_splits():
    """2 grid steps on dual-TensorCore chips (v7x / v4 / v5p megacore), else 1."""
    try:
        kind = jax.devices()[0].device_kind.lower()
    except Exception:  # pragma: no cover - CPU/interpret fallbacks
        return 1
    if "v7" in kind or "v4" in kind or "v5p" in kind:
        return 2
    return 1


def reward_model_kernel(num_layers, x_ref, *refs):
    """refs = (w0, b0, ..., w_{L-1}, b_{L-1}, wT_out, bT_out, out_ref)."""
    param_refs = refs[:-1]
    out_ref = refs[-1]

    h = x_ref[...]                                     # [tile, F] f32 or bf16

    # Hidden layers: Linear (bf16 MXU operands, f32 accumulate) + ELU (f32 VPU/EUP).
    for layer in range(num_layers):
        w = param_refs[2 * layer][...]                 # bf16 [in, H]
        b = param_refs[2 * layer + 1][...]             # f32  [1, H]
        a = h if h.dtype == w.dtype else h.astype(w.dtype)
        z = jnp.dot(a, w, preferred_element_type=jnp.float32) + b
        # ELU(alpha=1) in f32.  min() keeps exp finite for large positive z.
        # TODO(synk): jnp.expm1 would be marginally more accurate near 0; kept
        # as exp-1 for guaranteed Mosaic lowering (EUP exp + VPU select).
        h = jnp.where(z > 0.0, z, jnp.exp(jnp.minimum(z, 0.0)) - 1.0)

    # Output head: out_t[c, r] = sum_k wT[c, k] * h[r, k]  ->  lane-dense [2, tile].
    # (1,1)-contraction == trans_b matmul; no transpose of the activation tile.
    w_t = param_refs[2 * num_layers][...]              # bf16 [2, H]
    b_t = param_refs[2 * num_layers + 1][...]          # f32  [2, 1]
    a = h if h.dtype == w_t.dtype else h.astype(w_t.dtype)
    out_t = jax.lax.dot_general(
        w_t, a,
        dimension_numbers=(((1,), (1,)), ((), ())),
        preferred_element_type=jnp.float32) + b_t      # row 0: mean, row 1: logStd

    # Normal scale = exp(logStd): exponentiate only the logStd row (single store).
    row = jax.lax.broadcasted_iota(jnp.int32, out_t.shape, 0)
    out_ref[...] = jnp.where(row == 1, jnp.exp(out_t), out_t)


def reward_model_forward(x, params, *, max_rows_per_step=32768,
                         num_row_splits=None, mxu_dtype=jnp.bfloat16):
    """x: [B, F] float32 or bfloat16.  params: list of (W [in,out] f32, b [out] f32).

    Returns (mean [B], std [B]) -- the parameters of the Normal distribution
    produced by RewardModel.forward (squeeze(-1) applied).
    """
    x = jnp.asarray(x)
    if x.dtype not in (jnp.float32, jnp.bfloat16):
        x = x.astype(jnp.float32)
    B, F = x.shape
    num_layers = len(params) - 1

    # Row tiling: multiple of 128 (lane-dense output stores); whole batch in
    # one step on single-TC chips, two steps on dual-TC chips, capped.
    if num_row_splits is None:
        num_row_splits = _auto_num_row_splits()
    padded_min = _round_up(B, LANE)
    tile = _round_up(pl.cdiv(padded_min, num_row_splits), LANE)
    tile = min(tile, _round_up(max_rows_per_step, LANE))
    padded_b = _round_up(B, tile)
    if padded_b != B:
        x = jnp.pad(x, ((0, padded_b - B), (0, 0)))
    grid = (padded_b // tile,)

    # Parameter packing: weights -> bf16 (native MXU dtype, halves weight DMA),
    # biases -> f32.  Final layer pre-transposed so the kernel emits [2, tile].
    flat = []
    in_specs = [pl.BlockSpec((tile, F), lambda i: (i, 0))]
    for li, (w, b) in enumerate(params):
        if li == num_layers:
            w_k = jnp.asarray(w, mxu_dtype).T                    # [2, H]
            b_k = jnp.asarray(b, jnp.float32).reshape(-1, 1)     # [2, 1]
        else:
            w_k = jnp.asarray(w, mxu_dtype)                      # [in, H]
            b_k = jnp.asarray(b, jnp.float32).reshape(1, -1)     # [1, H]
        flat.extend([w_k, b_k])
        # Constant index_maps: parameters stay resident in VMEM across the grid.
        in_specs.append(pl.BlockSpec(w_k.shape, lambda i: (0, 0)))
        in_specs.append(pl.BlockSpec(b_k.shape, lambda i: (0, 0)))

    # Advisory cost estimate so XLA schedules the custom call sensibly.
    matmul_flops = 2 * padded_b * sum(w.shape[0] * w.shape[1] for w, _ in params)
    elu_exps = padded_b * sum(w.shape[1] for w, _ in params[:-1])
    param_bytes = sum(p.size * p.dtype.itemsize for p in flat)
    cost = pl.CostEstimate(
        flops=int(matmul_flops),
        transcendentals=int(elu_exps + 2 * padded_b),
        bytes_accessed=int(x.size * x.dtype.itemsize + param_bytes
                           + 2 * padded_b * 4),
    )

    out = pl.pallas_call(
        functools.partial(reward_model_kernel, num_layers),
        out_shape=jax.ShapeDtypeStruct((2, padded_b), jnp.float32),
        grid=grid,
        in_specs=in_specs,
        out_specs=pl.BlockSpec((2, tile), lambda i: (0, i)),
        compiler_params=pltpu.CompilerParams(
            dimension_semantics=("parallel",)),   # row tiles shard across TCs
        cost_estimate=cost,
    )(x, *flat)

    mean = out[0, :B]
    std = out[1, :B]
    return mean, std


def init_params(key, input_size, hidden_size, num_layers):
    """Deterministic synthetic parameter init (matches module shapes)."""
    sizes = [input_size] + [hidden_size] * num_layers + [2]
    params = []
    for i in range(len(sizes) - 1):
        key, kw, kb = jax.random.split(key, 3)
        scale = 1.0 / jnp.sqrt(jnp.float32(sizes[i]))
        w = jax.random.uniform(kw, (sizes[i], sizes[i + 1]),
                               minval=-scale, maxval=scale, dtype=jnp.float32)
        b = jax.random.uniform(kb, (sizes[i + 1],),
                               minval=-scale, maxval=scale, dtype=jnp.float32)
        params.append((w, b))
    return params


def _elu(z):
    return jnp.where(z > 0.0, z, jnp.exp(jnp.minimum(z, 0.0)) - 1.0)


def reference_forward(x, params, mxu_dtype=jnp.bfloat16):
    """Pure-JAX reference using the same bf16-operand / f32-accumulate recipe."""
    h = jnp.asarray(x, jnp.float32)
    for w, b in params[:-1]:
        z = jnp.dot(h.astype(mxu_dtype), w.astype(mxu_dtype),
                    preferred_element_type=jnp.float32) + b.reshape(1, -1)
        h = _elu(z)
    w, b = params[-1]
    out = jnp.dot(h.astype(mxu_dtype), w.astype(mxu_dtype),
                  preferred_element_type=jnp.float32) + b.reshape(1, -1)
    return out[:, 0], jnp.exp(out[:, 1])


def reference_forward_f32(x, params):
    """Full-precision reference (sanity bound for the bf16 matmul path)."""
    h = jnp.asarray(x, jnp.float32)
    for w, b in params[:-1]:
        h = _elu(h @ w + b.reshape(1, -1))
    w, b = params[-1]
    out = h @ w + b.reshape(1, -1)
    return out[:, 0], jnp.exp(out[:, 1])


if __name__ == "__main__":
    INPUT_SIZE, HIDDEN_SIZE, NUM_LAYERS = 32, 32, 2

    key = jax.random.PRNGKey(0)
    key, kx, kx2 = jax.random.split(key, 3)
    params = init_params(key, INPUT_SIZE, HIDDEN_SIZE, NUM_LAYERS)

    # Small batch (padded up to one lane-dense 128-row tile, 1 grid step).
    B = 8
    x = jax.random.normal(kx, (B, INPUT_SIZE), dtype=jnp.float32)
    mean, std = reward_model_forward(x, params)
    jax.block_until_ready((mean, std))

    ref_mean, ref_std = reference_forward(x, params)
    f32_mean, f32_std = reference_forward_f32(x, params)
    assert mean.shape == (B,) and std.shape == (B,)
    assert jnp.allclose(mean, ref_mean, atol=1e-3, rtol=1e-3)
    assert jnp.allclose(std, ref_std, atol=1e-3, rtol=1e-3)
    assert jnp.allclose(mean, f32_mean, atol=1e-1, rtol=1e-1)
    assert jnp.allclose(std, f32_std, atol=1e-1, rtol=1e-1)
    assert bool(jnp.all(std > 0))

    # Larger, non-multiple-of-tile batch with the auto (1 or 2 step) grid.
    B2 = 400
    x2 = jax.random.normal(kx2, (B2, INPUT_SIZE), dtype=jnp.float32)
    mean2, std2 = reward_model_forward(x2, params)
    jax.block_until_ready((mean2, std2))

    ref_mean2, ref_std2 = reference_forward(x2, params)
    assert mean2.shape == (B2,) and std2.shape == (B2,)
    assert jnp.allclose(mean2, ref_mean2, atol=1e-3, rtol=1e-3)
    assert jnp.allclose(std2, ref_std2, atol=1e-3, rtol=1e-3)
    assert bool(jnp.all(std2 > 0))

    # Forced multi-step "parallel" grid (exercises resident-weight revisiting).
    mean3, std3 = reward_model_forward(x2, params, max_rows_per_step=128)
    jax.block_until_ready((mean3, std3))
    assert jnp.allclose(mean3, ref_mean2, atol=1e-3, rtol=1e-3)
    assert jnp.allclose(std3, ref_std2, atol=1e-3, rtol=1e-3)

    # bf16 activations fed straight to the first MXU dot (no wrapper upconvert).
    x2_bf16 = x2.astype(jnp.bfloat16)
    mean4, std4 = reward_model_forward(x2_bf16, params)
    jax.block_until_ready((mean4, std4))
    ref_mean4, ref_std4 = reference_forward(x2_bf16, params)
    assert jnp.allclose(mean4, ref_mean4, atol=1e-2, rtol=1e-2)
    assert jnp.allclose(std4, ref_std4, atol=1e-2, rtol=1e-2)
    assert bool(jnp.all(std4 > 0))

    print("KERNEL_OK")
</pallas_src>

<mosaic_0001>
module attributes {stable_mosaic.version = 11 : i64} {
  func.func @reward_model_kernel(%arg0: i32, %arg1: memref<128x32xf32, #tpu.memory_space<vmem>>, %arg2: memref<32x32xbf16, #tpu.memory_space<vmem>>, %arg3: memref<1x32xf32, #tpu.memory_space<vmem>>, %arg4: memref<32x32xbf16, #tpu.memory_space<vmem>>, %arg5: memref<1x32xf32, #tpu.memory_space<vmem>>, %arg6: memref<2x32xbf16, #tpu.memory_space<vmem>>, %arg7: memref<2x1xf32, #tpu.memory_space<vmem>>, %arg8: memref<2x128xf32, #tpu.memory_space<vmem>>) attributes {dimension_semantics = [#tpu.dimension_semantics<parallel>], iteration_bounds = array<i64: 1>, scalar_prefetch = 0 : i64, scratch_operands = 0 : i64, tpu.core_type = #tpu.core_type<tc>, window_params = [{transform_indices = @transform_0, window_bounds = array<i64: 128, 32>}, {pipeline_mode = #tpu.pipeline_mode<synchronous>, transform_indices = @transform_1, window_bounds = array<i64: 32, 32>}, {pipeline_mode = #tpu.pipeline_mode<synchronous>, transform_indices = @transform_2, window_bounds = array<i64: 1, 32>}, {pipeline_mode = #tpu.pipeline_mode<synchronous>, transform_indices = @transform_3, window_bounds = array<i64: 32, 32>}, {pipeline_mode = #tpu.pipeline_mode<synchronous>, transform_indices = @transform_4, window_bounds = array<i64: 1, 32>}, {pipeline_mode = #tpu.pipeline_mode<synchronous>, transform_indices = @transform_5, window_bounds = array<i64: 2, 32>}, {pipeline_mode = #tpu.pipeline_mode<synchronous>, transform_indices = @transform_6, window_bounds = array<i64: 2, 1>}, {transform_indices = @transform_7, window_bounds = array<i64: 2, 128>}]} {
    %c0 = arith.constant 0 : index
    %c0_0 = arith.constant 0 : index
    %0 = vector.load %arg1[%c0, %c0_0] : memref<128x32xf32, #tpu.memory_space<vmem>>, vector<128x32xf32>
    %c0_1 = arith.constant 0 : index
    %c0_2 = arith.constant 0 : index
    %1 = vector.load %arg2[%c0_1, %c0_2] : memref<32x32xbf16, #tpu.memory_space<vmem>>, vector<32x32xbf16>
    %c0_3 = arith.constant 0 : index
    %c0_4 = arith.constant 0 : index
    %2 = vector.load %arg3[%c0_3, %c0_4] : memref<1x32xf32, #tpu.memory_space<vmem>>, vector<1x32xf32>
    %3 = arith.truncf %0 : vector<128x32xf32> to vector<128x32xbf16>
    %cst = arith.constant dense<0.000000e+00> : vector<128x32xf32>
    %4 = tpu.matmul %3, %1, %cst {dimension_numbers = #tpu.dot_dimension_numbers<[1], [0], [0], [1], [0, 0, 1, 1], [], []>} : vector<128x32xbf16>, vector<32x32xbf16>, vector<128x32xf32> -> vector<128x32xf32>
    %5 = vector.broadcast %2 : vector<1x32xf32> to vector<128x32xf32>
    %6 = arith.addf %4, %5 : vector<128x32xf32>
    %cst_5 = arith.constant 0.000000e+00 : f32
    %7 = vector.broadcast %cst_5 : f32 to vector<128x32xf32>
    %8 = arith.cmpf ogt, %6, %7 : vector<128x32xf32>
    %cst_6 = arith.constant 0.000000e+00 : f32
    %9 = vector.broadcast %cst_6 : f32 to vector<128x32xf32>
    %10 = arith.minimumf %6, %9 : vector<128x32xf32>
    %11 = math.exp %10 : vector<128x32xf32>
    %cst_7 = arith.constant 1.000000e+00 : f32
    %12 = vector.broadcast %cst_7 : f32 to vector<128x32xf32>
    %13 = arith.subf %11, %12 : vector<128x32xf32>
    %14 = arith.select %8, %6, %13 : vector<128x32xi1>, vector<128x32xf32>
    %c0_8 = arith.constant 0 : index
    %c0_9 = arith.constant 0 : index
    %15 = vector.load %arg4[%c0_8, %c0_9] : memref<32x32xbf16, #tpu.memory_space<vmem>>, vector<32x32xbf16>
    %c0_10 = arith.constant 0 : index
    %c0_11 = arith.constant 0 : index
    %16 = vector.load %arg5[%c0_10, %c0_11] : memref<1x32xf32, #tpu.memory_space<vmem>>, vector<1x32xf32>
    %17 = arith.truncf %14 : vector<128x32xf32> to vector<128x32xbf16>
    %cst_12 = arith.constant dense<0.000000e+00> : vector<128x32xf32>
    %18 = tpu.matmul %17, %15, %cst_12 {dimension_numbers = #tpu.dot_dimension_numbers<[1], [0], [0], [1], [0, 0, 1, 1], [], []>} : vector<128x32xbf16>, vector<32x32xbf16>, vector<128x32xf32> -> vector<128x32xf32>
    %19 = vector.broadcast %16 : vector<1x32xf32> to vector<128x32xf32>
    %20 = arith.addf %18, %19 : vector<128x32xf32>
    %cst_13 = arith.constant 0.000000e+00 : f32
    %21 = vector.broadcast %cst_13 : f32 to vector<128x32xf32>
    %22 = arith.cmpf ogt, %20, %21 : vector<128x32xf32>
    %cst_14 = arith.constant 0.000000e+00 : f32
    %23 = vector.broadcast %cst_14 : f32 to vector<128x32xf32>
    %24 = arith.minimumf %20, %23 : vector<128x32xf32>
    %25 = math.exp %24 : vector<128x32xf32>
    %cst_15 = arith.constant 1.000000e+00 : f32
    %26 = vector.broadcast %cst_15 : f32 to vector<128x32xf32>
    %27 = arith.subf %25, %26 : vector<128x32xf32>
    %28 = arith.select %22, %20, %27 : vector<128x32xi1>, vector<128x32xf32>
    %c0_16 = arith.constant 0 : index
    %c0_17 = arith.constant 0 : index
    %29 = vector.load %arg6[%c0_16, %c0_17] : memref<2x32xbf16, #tpu.memory_space<vmem>>, vector<2x32xbf16>
    %c0_18 = arith.constant 0 : index
    %c0_19 = arith.constant 0 : index
    %30 = vector.load %arg7[%c0_18, %c0_19] : memref<2x1xf32, #tpu.memory_space<vmem>>, vector<2x1xf32>
    %31 = arith.truncf %28 : vector<128x32xf32> to vector<128x32xbf16>
    %cst_20 = arith.constant dense<0.000000e+00> : vector<2x128xf32>
    %32 = tpu.matmul %29, %31, %cst_20 {dimension_numbers = #tpu.dot_dimension_numbers<[1], [1], [0], [0], [0, 0, 1, 0], [], []>} : vector<2x32xbf16>, vector<128x32xbf16>, vector<2x128xf32> -> vector<2x128xf32>
    %33 = vector.broadcast %30 : vector<2x1xf32> to vector<2x128xf32>
    %34 = arith.addf %32, %33 : vector<2x128xf32>
    %35 = tpu.iota {dimensions = array<i32: 0>} : vector<2x128xi32>
    %c1_i32 = arith.constant 1 : i32
    %36 = vector.broadcast %c1_i32 : i32 to vector<2x128xi32>
    %37 = arith.cmpi eq, %35, %36 : vector<2x128xi32>
    %38 = math.exp %34 : vector<2x128xf32>
    %39 = arith.select %37, %38, %34 : vector<2x128xi1>, vector<2x128xf32>
    %c0_21 = arith.constant 0 : index
    %c0_22 = arith.constant 0 : index
    %40 = vector.load %arg8[%c0_21, %c0_22] : memref<2x128xf32, #tpu.memory_space<vmem>>, vector<2x128xf32>
    tpu.vector_store %arg8[%c0_21, %c0_22], %39 {strides = array<i32>} : memref<2x128xf32, #tpu.memory_space<vmem>>, vector<2x128xf32>,
    return
  }
  func.func @transform_0(%arg0: i32) -> (i32, i32) {
    %c0_i32 = arith.constant 0 : i32
    %c0_i32_0 = arith.constant 0 : i32
    return %arg0, %c0_i32 : i32, i32
  }
  func.func @transform_1(%arg0: i32) -> (i32, i32) {
    %c0_i32 = arith.constant 0 : i32
    %c0_i32_0 = arith.constant 0 : i32
    %c0_i32_1 = arith.constant 0 : i32
    return %c0_i32, %c0_i32_0 : i32, i32
  }
  func.func @transform_2(%arg0: i32) -> (i32, i32) {
    %c0_i32 = arith.constant 0 : i32
    %c0_i32_0 = arith.constant 0 : i32
    %c0_i32_1 = arith.constant 0 : i32
    return %c0_i32, %c0_i32_0 : i32, i32
  }
  func.func @transform_3(%arg0: i32) -> (i32, i32) {
    %c0_i32 = arith.constant 0 : i32
    %c0_i32_0 = arith.constant 0 : i32
    %c0_i32_1 = arith.constant 0 : i32
    return %c0_i32, %c0_i32_0 : i32, i32
  }
  func.func @transform_4(%arg0: i32) -> (i32, i32) {
    %c0_i32 = arith.constant 0 : i32
    %c0_i32_0 = arith.constant 0 : i32
    %c0_i32_1 = arith.constant 0 : i32
    return %c0_i32, %c0_i32_0 : i32, i32
  }
  func.func @transform_5(%arg0: i32) -> (i32, i32) {
    %c0_i32 = arith.constant 0 : i32
    %c0_i32_0 = arith.constant 0 : i32
    %c0_i32_1 = arith.constant 0 : i32
    return %c0_i32, %c0_i32_0 : i32, i32
  }
  func.func @transform_6(%arg0: i32) -> (i32, i32) {
    %c0_i32 = arith.constant 0 : i32
    %c0_i32_0 = arith.constant 0 : i32
    %c0_i32_1 = arith.constant 0 : i32
    return %c0_i32, %c0_i32_0 : i32, i32
  }
  func.func @transform_7(%arg0: i32) -> (i32, i32) {
    %c0_i32 = arith.constant 0 : i32
    %c0_i32_0 = arith.constant 0 : i32
    return %c0_i32, %arg0 : i32, i32
  }
}

</mosaic_0001>

<llo_original>
// kernel: tpu_custom_call.1
$region0: #{tpu_custom_call.1}
  #allocation0 [shape = 'u32[]', space=smem, size = 0x4, offset = 0x4, fixed_abs, tag = 'smem constant byte address 0x4 - core index']
  #allocation1 [shape = 'u32[72,128]{1,0:T(1,128)}', space=vmem, size = 0x9000, scoped, tag = 'internal scratch']
  %s0 = inlined_call_operand.vmem [shape: f32[128,32], index: 0, kind: input, shape index: {}]
  %s1 = inlined_call_operand.vmem [shape: bf16[32,32], index: 1, kind: input, shape index: {}]
  %s2 = inlined_call_operand.vmem [shape: f32[1,32], index: 2, kind: input, shape index: {}]
  %s3 = inlined_call_operand.vmem [shape: bf16[32,32], index: 3, kind: input, shape index: {}]
  %s4 = inlined_call_operand.vmem [shape: f32[1,32], index: 4, kind: input, shape index: {}]
  %s5 = inlined_call_operand.vmem [shape: bf16[2,32], index: 5, kind: input, shape index: {}]
  %s6 = inlined_call_operand.vmem [shape: f32[2,1], index: 6, kind: input, shape index: {}]
  %s7 = inlined_call_operand.hbm [shape: f32[2,128], index: 7, kind: output, shape index: {}]
  %s8 = sld [smem:[#allocation0]]
  $region38: #{tpu_custom_call.1} parent=0
    _
  %s10 = ssub.s32 1, %s8
  %s11 = scalar_select 0, %s10, %s8
  $region1: #{tpu_custom_call.1} parent=0
    #allocation2 [shape = 'u8[1024]{0}', space=vmem, size = 0x400, scoped, tag = 'output window, operand 0, single buffered']
    #allocation3 [shape = 's32[1]{0}', space=sflag, size = 0x4, scoped, tag = 'scoped memory for tpu_custom_call.1']
    %12 = vsyncpa [#allocation3], 0
    // Predicated region
    $region2: #{tpu_custom_call.1} parent=1 // pred_check
      _
    $region3: #{tpu_custom_call.1} parent=1 // pred_check_branch
      %14 = sbr.rel (0) target = $region5
    $region4: #{tpu_custom_call.1} parent=1 // pred_region
      _
    $region5: #{tpu_custom_call.1} parent=1 // pred_fallthru
      _
    // Predicated region
    $region6: #{tpu_custom_call.1} parent=1 // pred_check
      _
    $region7: #{tpu_custom_call.1} parent=1 // pred_check_branch
      %16 = sbr.rel (0) target = $region9
    $region8: #{tpu_custom_call.1} parent=1 // pred_region
      _
    $region9: #{tpu_custom_call.1} parent=1 // pred_fallthru
      _
    // Predicated region
    $region10: #{tpu_custom_call.1} parent=1 // pred_check
      _
    $region11: #{tpu_custom_call.1} parent=1 // pred_check_branch
      %18 = sbr.rel (0) target = $region13
    $region12: #{tpu_custom_call.1} parent=1 // pred_region
      _
    $region13: #{tpu_custom_call.1} parent=1 // pred_fallthru
      _
    // Predicated region
    $region14: #{tpu_custom_call.1} parent=1 // pred_check
      _
    $region15: #{tpu_custom_call.1} parent=1 // pred_check_branch
      %20 = sbr.rel (0) target = $region17
    $region16: #{tpu_custom_call.1} parent=1 // pred_region
      _
    $region17: #{tpu_custom_call.1} parent=1 // pred_fallthru
      _
    // Predicated region
    $region18: #{tpu_custom_call.1} parent=1 // pred_check
      _
    $region19: #{tpu_custom_call.1} parent=1 // pred_check_branch
      %22 = sbr.rel (0) target = $region21
    $region20: #{tpu_custom_call.1} parent=1 // pred_region
      _
    $region21: #{tpu_custom_call.1} parent=1 // pred_fallthru
      _
    // Predicated region
    $region22: #{tpu_custom_call.1} parent=1 // pred_check
      _
    $region23: #{tpu_custom_call.1} parent=1 // pred_check_branch
      %24 = sbr.rel (0) target = $region25
    $region24: #{tpu_custom_call.1} parent=1 // pred_region
      _
    $region25: #{tpu_custom_call.1} parent=1 // pred_fallthru
      _
    // Predicated region
    $region26: #{tpu_custom_call.1} parent=1 // pred_check
      _
    $region27: #{tpu_custom_call.1} parent=1 // pred_check_branch
      %26 = sbr.rel (0) target = $region29
    $region28: #{tpu_custom_call.1} parent=1 // pred_region
      _
    $region29: #{tpu_custom_call.1} parent=1 // pred_fallthru
      _
    %v28 = vld [vmem:[%s0] sm:$0xff]
    %v29 = vld [vmem:[%s0 + $0x8] sm:$0xff]
    %v30 = vld [vmem:[%s0 + $0x10] sm:$0xff]
    %v31 = vld [vmem:[%s0 + $0x18] sm:$0xff]
    %v32 = vld [vmem:[%s0 + $0x20] sm:$0xff]
    %v33 = vld [vmem:[%s0 + $0x28] sm:$0xff]
    %v34 = vld [vmem:[%s0 + $0x30] sm:$0xff]
    %v35 = vld [vmem:[%s0 + $0x38] sm:$0xff]
    %v36 = vld [vmem:[%s0 + $0x40] sm:$0xff]
    %v37 = vld [vmem:[%s0 + $0x48] sm:$0xff]
    %v38 = vld [vmem:[%s0 + $0x50] sm:$0xff]
    %v39 = vld [vmem:[%s0 + $0x58] sm:$0xff]
    %v40 = vld [vmem:[%s0 + $0x60] sm:$0xff]
    %v41 = vld [vmem:[%s0 + $0x68] sm:$0xff]
    %v42 = vld [vmem:[%s0 + $0x70] sm:$0xff]
    %v43 = vld [vmem:[%s0 + $0x78] sm:$0xff]
    %v44 = vld [vmem:[%s1] sm:$0xf]
    %v45 = vld [vmem:[%s1 + $0x4] sm:$0xf]
    %v46 = vld [vmem:[%s1 + $0x8] sm:$0xf]
    %v47 = vld [vmem:[%s1 + $0xc] sm:$0xf]
    %v48 = vld [vmem:[%s2] sm:$0x1]
    %v49 = vpack.c.bf16 %v29, %v28
    %v50 = vpack.c.bf16 %v31, %v30
    %v51 = vpack.c.bf16 %v33, %v32
    %v52 = vpack.c.bf16 %v35, %v34
    %v53 = vpack.c.bf16 %v37, %v36
    %v54 = vpack.c.bf16 %v39, %v38
    %v55 = vpack.c.bf16 %v41, %v40
    %v56 = vpack.c.bf16 %v43, %v42
    %v58 = vperm.slane %v48, 0
    %v64 = vunpack.c.l.b16 %v44
    %v65 = vunpack.c.l.b16 %v45
    %v66 = vunpack.c.l.b16 %v46
    %v67 = vunpack.c.l.b16 %v47
    %v68 = vpack.c.b16 %v65, %v64
    %v69 = vpack.c.b16 %v67, %v66
    %vm72 = vcmask 261120
    %v74 = vsel %vm72, %v49, 0
    %v77 = vsel %vm72, %v50, 0
    %v80 = vsel %vm72, %v51, 0
    %v83 = vsel %vm72, %v52, 0
    %v86 = vsel %vm72, %v53, 0
    %v89 = vsel %vm72, %v54, 0
    %v92 = vsel %vm72, %v55, 0
    %v95 = vsel %vm72, %v56, 0
    %97 = vmatpush.bf16.msra.mxu0 0
    %98 = vmatpush.bf16.msra.mxu0 0
    %99 = vmatpush.bf16.msra.mxu0 0
    %100 = vmatpush.bf16.msra.mxu0 0
    %101 = vmatpush.bf16.msra.mxu0 0
    %102 = vmatpush.bf16.msra.mxu0 0
    %103 = vmatpush.bf16.msra.mxu0 %v69
    %104 = vmatpush.bf16.msra.mxu0 %v68
    %105 = vmatmul.bf16.gmra.mxu0 %v74
    %v106 = vpop.f32.mrf.mxu0
    %v107 = vadd.f32 %v58, %v106
    %v108 = vpop.f32.mrf.mxu0
    %v109 = vadd.f32 %v58, %v108
    %110 = vmatmul.bf16.gmra.mxu0 %v77
    %v111 = vpop.f32.mrf.mxu0
    %v112 = vadd.f32 %v58, %v111
    %v113 = vpop.f32.mrf.mxu0
    %v114 = vadd.f32 %v58, %v113
    %115 = vmatmul.bf16.gmra.mxu0 %v80
    %v116 = vpop.f32.mrf.mxu0
    %v117 = vadd.f32 %v58, %v116
    %v118 = vpop.f32.mrf.mxu0
    %v119 = vadd.f32 %v58, %v118
    %120 = vmatmul.bf16.gmra.mxu0 %v83
    %v121 = vpop.f32.mrf.mxu0
    %v122 = vadd.f32 %v58, %v121
    %v123 = vpop.f32.mrf.mxu0
    %v124 = vadd.f32 %v58, %v123
    %125 = vmatmul.bf16.gmra.mxu0 %v86
    %v126 = vpop.f32.mrf.mxu0
    %v127 = vadd.f32 %v58, %v126
    %v128 = vpop.f32.mrf.mxu0
    %v129 = vadd.f32 %v58, %v128
    %130 = vmatmul.bf16.gmra.mxu0 %v89
    %v131 = vpop.f32.mrf.mxu0
    %v132 = vadd.f32 %v58, %v131
    %v133 = vpop.f32.mrf.mxu0
    %v134 = vadd.f32 %v58, %v133
    %135 = vmatmul.bf16.gmra.mxu0 %v92
    %v136 = vpop.f32.mrf.mxu0
    %v137 = vadd.f32 %v58, %v136
    %v138 = vpop.f32.mrf.mxu0
    %v139 = vadd.f32 %v58, %v138
    %140 = vmatmul.bf16.gmra.mxu0 %v95
    %v141 = vpop.f32.mrf.mxu0
    %v142 = vadd.f32 %v58, %v141
    %v143 = vpop.f32.mrf.mxu0
    %v144 = vadd.f32 %v58, %v143
    %145 = vdwg.mxu0
    %vm146 = vcmp.gt.f32.partialorder %v107, 0.0
    %vm147 = vcmp.gt.f32.partialorder %v109, 0.0
    %vm148 = vcmp.gt.f32.partialorder %v112, 0.0
    %vm149 = vcmp.gt.f32.partialorder %v114, 0.0
    %vm150 = vcmp.gt.f32.partialorder %v117, 0.0
    %vm151 = vcmp.gt.f32.partialorder %v119, 0.0
    %vm152 = vcmp.gt.f32.partialorder %v122, 0.0
    %vm153 = vcmp.gt.f32.partialorder %v124, 0.0
    %vm154 = vcmp.gt.f32.partialorder %v127, 0.0
    %vm155 = vcmp.gt.f32.partialorder %v129, 0.0
    %vm156 = vcmp.gt.f32.partialorder %v132, 0.0
    %vm157 = vcmp.gt.f32.partialorder %v134, 0.0
    %vm158 = vcmp.gt.f32.partialorder %v137, 0.0
    %vm159 = vcmp.gt.f32.partialorder %v139, 0.0
    %vm160 = vcmp.gt.f32.partialorder %v142, 0.0
    %vm161 = vcmp.gt.f32.partialorder %v144, 0.0
    %v162 = vmin.f32 %v107, 0.0
    %v163 = vmin.f32 %v109, 0.0
    %v164 = vmin.f32 %v112, 0.0
    %v165 = vmin.f32 %v114, 0.0
    %v166 = vmin.f32 %v117, 0.0
    %v167 = vmin.f32 %v119, 0.0
    %v168 = vmin.f32 %v122, 0.0
    %v169 = vmin.f32 %v124, 0.0
    %v170 = vmin.f32 %v127, 0.0
    %v171 = vmin.f32 %v129, 0.0
    %v172 = vmin.f32 %v132, 0.0
    %v173 = vmin.f32 %v134, 0.0
    %v174 = vmin.f32 %v137, 0.0
    %v175 = vmin.f32 %v139, 0.0
    %v176 = vmin.f32 %v142, 0.0
    %v177 = vmin.f32 %v144, 0.0
    %v178 = vmul.f32 %v162, 1.442695
    %v179 = vpow.pop %v178
    %v180 = vmul.f32 %v163, 1.442695
    %v181 = vpow.pop %v180
    %v182 = vmul.f32 %v164, 1.442695
    %v183 = vpow.pop %v182
    %v184 = vmul.f32 %v165, 1.442695
    %v185 = vpow.pop %v184
    %v186 = vmul.f32 %v166, 1.442695
    %v187 = vpow.pop %v186
    %v188 = vmul.f32 %v167, 1.442695
    %v189 = vpow.pop %v188
    %v190 = vmul.f32 %v168, 1.442695
    %v191 = vpow.pop %v190
    %v192 = vmul.f32 %v169, 1.442695
    %v193 = vpow.pop %v192
    %v194 = vmul.f32 %v170, 1.442695
    %v195 = vpow.pop %v194
    %v196 = vmul.f32 %v171, 1.442695
    %v197 = vpow.pop %v196
    %v198 = vmul.f32 %v172, 1.442695
    %v199 = vpow.pop %v198
    %v200 = vmul.f32 %v173, 1.442695
    %v201 = vpow.pop %v200
    %v202 = vmul.f32 %v174, 1.442695
    %v203 = vpow.pop %v202
    %v204 = vmul.f32 %v175, 1.442695
    %v205 = vpow.pop %v204
    %v206 = vmul.f32 %v176, 1.442695
    %v207 = vpow.pop %v206
    %v208 = vmul.f32 %v177, 1.442695
    %v209 = vpow.pop %v208
    %v210 = vsub.f32 %v179, 1.0
    %v211 = vsub.f32 %v181, 1.0
    %v212 = vsub.f32 %v183, 1.0
    %v213 = vsub.f32 %v185, 1.0
    %v214 = vsub.f32 %v187, 1.0
    %v215 = vsub.f32 %v189, 1.0
    %v216 = vsub.f32 %v191, 1.0
    %v217 = vsub.f32 %v193, 1.0
    %v218 = vsub.f32 %v195, 1.0
    %v219 = vsub.f32 %v197, 1.0
    %v220 = vsub.f32 %v199, 1.0
    %v221 = vsub.f32 %v201, 1.0
    %v222 = vsub.f32 %v203, 1.0
    %v223 = vsub.f32 %v205, 1.0
    %v224 = vsub.f32 %v207, 1.0
    %v225 = vsub.f32 %v209, 1.0
    %v226 = vsel %vm146, %v107, %v210
    %v227 = vsel %vm147, %v109, %v211
    %v228 = vsel %vm148, %v112, %v212
    %v229 = vsel %vm149, %v114, %v213
    %v230 = vsel %vm150, %v117, %v214
    %v231 = vsel %vm151, %v119, %v215
    %v232 = vsel %vm152, %v122, %v216
    %v233 = vsel %vm153, %v124, %v217
    %v234 = vsel %vm154, %v127, %v218
    %v235 = vsel %vm155, %v129, %v219
    %v236 = vsel %vm156, %v132, %v220
    %v237 = vsel %vm157, %v134, %v221
    %v238 = vsel %vm158, %v137, %v222
    %v239 = vsel %vm159, %v139, %v223
    %v240 = vsel %vm160, %v142, %v224
    %v241 = vsel %vm161, %v144, %v225
    %v242 = vld [vmem:[%s3] sm:$0xf]
    %v243 = vld [vmem:[%s3 + $0x4] sm:$0xf]
    %v244 = vld [vmem:[%s3 + $0x8] sm:$0xf]
    %v245 = vld [vmem:[%s3 + $0xc] sm:$0xf]
    %v246 = vld [vmem:[%s4] sm:$0x1]
    %v247 = vpack.c.bf16 %v227, %v226
    %v248 = vpack.c.bf16 %v229, %v228
    %v249 = vpack.c.bf16 %v231, %v230
    %v250 = vpack.c.bf16 %v233, %v232
    %v251 = vpack.c.bf16 %v235, %v234
    %v252 = vpack.c.bf16 %v237, %v236
    %v253 = vpack.c.bf16 %v239, %v238
    %v254 = vpack.c.bf16 %v241, %v240
    %v256 = vperm.slane %v246, 0
    %v262 = vunpack.c.l.b16 %v242
    %v263 = vunpack.c.l.b16 %v243
    %v264 = vunpack.c.l.b16 %v244
    %v265 = vunpack.c.l.b16 %v245
    %v266 = vpack.c.b16 %v263, %v262
    %v267 = vpack.c.b16 %v265, %v264
    %v271 = vsel %vm72, %v247, 0
    %v274 = vsel %vm72, %v248, 0
    %v277 = vsel %vm72, %v249, 0
    %v280 = vsel %vm72, %v250, 0
    %v283 = vsel %vm72, %v251, 0
    %v286 = vsel %vm72, %v252, 0
    %v289 = vsel %vm72, %v253, 0
    %v292 = vsel %vm72, %v254, 0
    %294 = vmatpush.bf16.msra.mxu0 0
    %295 = vmatpush.bf16.msra.mxu0 0
    %296 = vmatpush.bf16.msra.mxu0 0
    %297 = vmatpush.bf16.msra.mxu0 0
    %298 = vmatpush.bf16.msra.mxu0 0
    %299 = vmatpush.bf16.msra.mxu0 0
    %300 = vmatpush.bf16.msra.mxu0 %v267
    %301 = vmatpush.bf16.msra.mxu0 %v266
    %302 = vmatmul.bf16.gmra.mxu0 %v271
    %v303 = vpop.f32.mrf.mxu0
    %v304 = vadd.f32 %v256, %v303
    %v305 = vpop.f32.mrf.mxu0
    %v306 = vadd.f32 %v256, %v305
    %307 = vmatmul.bf16.gmra.mxu0 %v274
    %v308 = vpop.f32.mrf.mxu0
    %v309 = vadd.f32 %v256, %v308
    %v310 = vpop.f32.mrf.mxu0
    %v311 = vadd.f32 %v256, %v310
    %312 = vmatmul.bf16.gmra.mxu0 %v277
    %v313 = vpop.f32.mrf.mxu0
    %v314 = vadd.f32 %v256, %v313
    %v315 = vpop.f32.mrf.mxu0
    %v316 = vadd.f32 %v256, %v315
    %317 = vmatmul.bf16.gmra.mxu0 %v280
    %v318 = vpop.f32.mrf.mxu0
    %v319 = vadd.f32 %v256, %v318
    %v320 = vpop.f32.mrf.mxu0
    %v321 = vadd.f32 %v256, %v320
    %322 = vmatmul.bf16.gmra.mxu0 %v283
    %v323 = vpop.f32.mrf.mxu0
    %v324 = vadd.f32 %v256, %v323
    %v325 = vpop.f32.mrf.mxu0
    %v326 = vadd.f32 %v256, %v325
    %327 = vmatmul.bf16.gmra.mxu0 %v286
    %v328 = vpop.f32.mrf.mxu0
    %v329 = vadd.f32 %v256, %v328
    %v330 = vpop.f32.mrf.mxu0
    %v331 = vadd.f32 %v256, %v330
    %332 = vmatmul.bf16.gmra.mxu0 %v289
    %v333 = vpop.f32.mrf.mxu0
    %v334 = vadd.f32 %v256, %v333
    %v335 = vpop.f32.mrf.mxu0
    %v336 = vadd.f32 %v256, %v335
    %337 = vmatmul.bf16.gmra.mxu0 %v292
    %v338 = vpop.f32.mrf.mxu0
    %v339 = vadd.f32 %v256, %v338
    %v340 = vpop.f32.mrf.mxu0
    %v341 = vadd.f32 %v256, %v340
    %342 = vdwg.mxu0
    %vm343 = vcmp.gt.f32.partialorder %v304, 0.0
    %vm344 = vcmp.gt.f32.partialorder %v306, 0.0
    %vm345 = vcmp.gt.f32.partialorder %v309, 0.0
    %vm346 = vcmp.gt.f32.partialorder %v311, 0.0
    %vm347 = vcmp.gt.f32.partialorder %v314, 0.0
    %vm348 = vcmp.gt.f32.partialorder %v316, 0.0
    %vm349 = vcmp.gt.f32.partialorder %v319, 0.0
    %vm350 = vcmp.gt.f32.partialorder %v321, 0.0
    %vm351 = vcmp.gt.f32.partialorder %v324, 0.0
    %vm352 = vcmp.gt.f32.partialorder %v326, 0.0
    %vm353 = vcmp.gt.f32.partialorder %v329, 0.0
    %vm354 = vcmp.gt.f32.partialorder %v331, 0.0
    %vm355 = vcmp.gt.f32.partialorder %v334, 0.0
    %vm356 = vcmp.gt.f32.partialorder %v336, 0.0
    %vm357 = vcmp.gt.f32.partialorder %v339, 0.0
    %vm358 = vcmp.gt.f32.partialorder %v341, 0.0
    %v359 = vmin.f32 %v304, 0.0
    %v360 = vmin.f32 %v306, 0.0
    %v361 = vmin.f32 %v309, 0.0
    %v362 = vmin.f32 %v311, 0.0
    %v363 = vmin.f32 %v314, 0.0
    %v364 = vmin.f32 %v316, 0.0
    %v365 = vmin.f32 %v319, 0.0
    %v366 = vmin.f32 %v321, 0.0
    %v367 = vmin.f32 %v324, 0.0
    %v368 = vmin.f32 %v326, 0.0
    %v369 = vmin.f32 %v329, 0.0
    %v370 = vmin.f32 %v331, 0.0
    %v371 = vmin.f32 %v334, 0.0
    %v372 = vmin.f32 %v336, 0.0
    %v373 = vmin.f32 %v339, 0.0
    %v374 = vmin.f32 %v341, 0.0
    %v375 = vmul.f32 %v359, 1.442695
    %v376 = vpow.pop %v375
    %v377 = vmul.f32 %v360, 1.442695
    %v378 = vpow.pop %v377
    %v379 = vmul.f32 %v361, 1.442695
    %v380 = vpow.pop %v379
    %v381 = vmul.f32 %v362, 1.442695
    %v382 = vpow.pop %v381
    %v383 = vmul.f32 %v363, 1.442695
    %v384 = vpow.pop %v383
    %v385 = vmul.f32 %v364, 1.442695
    %v386 = vpow.pop %v385
    %v387 = vmul.f32 %v365, 1.442695
    %v388 = vpow.pop %v387
    %v389 = vmul.f32 %v366, 1.442695
    %v390 = vpow.pop %v389
    %v391 = vmul.f32 %v367, 1.442695
    %v392 = vpow.pop %v391
    %v393 = vmul.f32 %v368, 1.442695
    %v394 = vpow.pop %v393
    %v395 = vmul.f32 %v369, 1.442695
    %v396 = vpow.pop %v395
    %v397 = vmul.f32 %v370, 1.442695
    %v398 = vpow.pop %v397
    %v399 = vmul.f32 %v371, 1.442695
    %v400 = vpow.pop %v399
    %v401 = vmul.f32 %v372, 1.442695
    %v402 = vpow.pop %v401
    %v403 = vmul.f32 %v373, 1.442695
    %v404 = vpow.pop %v403
    %v405 = vmul.f32 %v374, 1.442695
    %v406 = vpow.pop %v405
    %v407 = vsub.f32 %v376, 1.0
    %v408 = vsub.f32 %v378, 1.0
    %v409 = vsub.f32 %v380, 1.0
    %v410 = vsub.f32 %v382, 1.0
    %v411 = vsub.f32 %v384, 1.0
    %v412 = vsub.f32 %v386, 1.0
    %v413 = vsub.f32 %v388, 1.0
    %v414 = vsub.f32 %v390, 1.0
    %v415 = vsub.f32 %v392, 1.0
    %v416 = vsub.f32 %v394, 1.0
    %v417 = vsub.f32 %v396, 1.0
    %v418 = vsub.f32 %v398, 1.0
    %v419 = vsub.f32 %v400, 1.0
    %v420 = vsub.f32 %v402, 1.0
    %v421 = vsub.f32 %v404, 1.0
    %v422 = vsub.f32 %v406, 1.0
    %v423 = vsel %vm343, %v304, %v407
    %v424 = vsel %vm344, %v306, %v408
    %v425 = vsel %vm345, %v309, %v409
    %v426 = vsel %vm346, %v311, %v410
    %v427 = vsel %vm347, %v314, %v411
    %v428 = vsel %vm348, %v316, %v412
    %v429 = vsel %vm349, %v319, %v413
    %v430 = vsel %vm350, %v321, %v414
    %v431 = vsel %vm351, %v324, %v415
    %v432 = vsel %vm352, %v326, %v416
    %v433 = vsel %vm353, %v329, %v417
    %v434 = vsel %vm354, %v331, %v418
    %v435 = vsel %vm355, %v334, %v419
    %v436 = vsel %vm356, %v336, %v420
    %v437 = vsel %vm357, %v339, %v421
    %v438 = vsel %vm358, %v341, %v422
    %v439 = vld [vmem:[%s5] sm:$0x1]
    %v440 = vld [vmem:[%s6] sm:$0x3]
    %v441 = vpack.c.bf16 %v424, %v423
    %v442 = vpack.c.bf16 %v426, %v425
    %v443 = vpack.c.bf16 %v428, %v427
    %v444 = vpack.c.bf16 %v430, %v429
    %v445 = vpack.c.bf16 %v432, %v431
    %v446 = vpack.c.bf16 %v434, %v433
    %v447 = vpack.c.bf16 %v436, %v435
    %v448 = vpack.c.bf16 %v438, %v437
    %450 = vset.pattern.permute.xlu0 0
    %451 = vperm.xlu0 %450, %v440
    %v452 = vpop.permute.xlu0 %451
    %v455 = vsel %vm72, %v439, 0
    %v458 = vsel %vm72, %v441, 0
    %v461 = vsel %vm72, %v442, 0
    %v464 = vsel %vm72, %v443, 0
    %v467 = vsel %vm72, %v444, 0
    %v470 = vsel %vm72, %v445, 0
    %v473 = vsel %vm72, %v446, 0
    %v476 = vsel %vm72, %v447, 0
    %v479 = vsel %vm72, %v448, 0
    %481 = vmatpush.bf16.xpose.msra.mxu0 %v479
    %482 = vmatpush.bf16.xpose.msra.mxu0 %v476
    %483 = vmatpush.bf16.xpose.msra.mxu0 %v473
    %484 = vmatpush.bf16.xpose.msra.mxu0 %v470
    %485 = vmatpush.bf16.xpose.msra.mxu0 %v467
    %486 = vmatpush.bf16.xpose.msra.mxu0 %v464
    %487 = vmatpush.bf16.xpose.msra.mxu0 %v461
    %488 = vmatpush.bf16.xpose.msra.mxu0 %v458
    %489 = vmatmul.bf16.gmra.mxu0 %v455
    %v490 = vpop.f32.mrf.mxu0
    %v491 = vadd.f32 %v452, %v490
    %v492 = vpop.f32.mrf.mxu0
    %493 = vdwg.mxu0
    %v494 = vlaneseq
    %v495 = vshrl.u32 %v494, 7
    %vm496 = vcmp.eq.s32.totalorder %v495, 1
    %v497 = vmul.f32 %v491, 1.442695
    %v498 = vpow.pop %v497
    %v499 = vsel %vm496, %v498, %v491
    %500 = vst [vmem:[#allocation2] sm:$0x3] %v499
    // Predicated region
    $region30: #{tpu_custom_call.1} parent=1 // pred_check
      _
    $region31: #{tpu_custom_call.1} parent=1 // pred_check_branch
      %502 = sbr.rel (0) target = $region33
    $region32: #{tpu_custom_call.1} parent=1 // pred_region
      %504 = vsyncadd [#allocation3], 0
      %s506 = sshll.u32 [#allocation2], 4
      %s507 = int_to_ptr.vmem [resolvable:$true] %s506
      %s508 = sshll.u32 %s7, 4
      %s509 = int_to_ptr.hbm [resolvable:$true] %s508
      %511 = dma.vmem_to_hbm [thread:$0]  %s507, 32, %s509, [#allocation3]
    $region33: #{tpu_custom_call.1} parent=1 // pred_fallthru
      _
    // Predicated region
    $region34: #{tpu_custom_call.1} parent=1 // pred_check
      _
    $region35: #{tpu_custom_call.1} parent=1 // pred_check_branch
      %513 = sbr.rel (0) target = $region37
    $region36: #{tpu_custom_call.1} parent=1 // pred_region
      %515 = dma.done [#allocation3], 32
    $region37: #{tpu_custom_call.1} parent=1 // pred_fallthru
      _
    %516 = vsyncpa [#allocation3], 1

</llo_original>
